<compile_context>
chip_gen: v7x
topology: tpu7x:2x2x1
jax: 0.10.0
libtpu: 0.0.40
codegen_flags: <defaults>
</compile_context>

<pallas_src>
import functools

import jax
import jax.numpy as jnp
from jax import lax
from jax.experimental import pallas as pl
from jax.experimental.pallas import tpu as pltpu


_INV_SQRT2 = 0.7071067811865476


def _round_up(n, m):
    return ((n + m - 1) // m) * m


def _geglu_kernel(x_ref, wv_ref, wg_ref, bv_ref, bg_ref, o_ref):
    # x_ref : (tm, dim_in)   input rows, native dtype
    # wv_ref: (tn, dim_in)   "value" rows of the PyTorch-layout proj weight
    # wg_ref: (tn, dim_in)   "gate"  rows of the PyTorch-layout proj weight
    # bv_ref: (1, tn)        "value" bias slab
    # bg_ref: (1, tn)        "gate"  bias slab
    # o_ref : (tm, tn)
    x = x_ref[...]
    # Contract feature axis of x (dim 1) with feature axis of the
    # PyTorch-layout weight (dim 1): y = x @ W.T directly on the MXU, with
    # f32 accumulation.  Operands stay in their native dtype.
    dn = (((1,), (1,)), ((), ()))
    h = lax.dot_general(x, wv_ref[...], dn, preferred_element_type=jnp.float32)
    g = lax.dot_general(x, wg_ref[...], dn, preferred_element_type=jnp.float32)
    h = h + bv_ref[...].astype(jnp.float32)
    g = g + bg_ref[...].astype(jnp.float32)
    # Exact (erf) GELU in f32, matching torch.nn.functional.gelu default.
    gelu_g = 0.5 * g * (1.0 + lax.erf(g * jnp.float32(_INV_SQRT2)))
    o_ref[...] = (h * gelu_g).astype(o_ref.dtype)


@functools.partial(
    jax.jit,
    static_argnames=("tm", "tn", "rows_inner", "single_buffer",
                     "vmem_limit_bytes"),
)
def _geglu_call(xm, w, bv, bg, *, tm, tn, rows_inner, single_buffer,
                vmem_limit_bytes):
    Mp, dim_in = xm.shape
    dim_out = bv.shape[1]
    ni = Mp // tm                 # row tiles
    nj = dim_out // tn            # output-column (weight-slab) tiles
    gate_off = dim_out // tn      # gate half of w starts at this block index

    # Single-buffer the operands that are invariant along the INNER grid
    # axis (they are only re-fetched when the outer index changes).
    sb = dict(pipeline_mode=pl.Buffered(1)) if single_buffer else {}

    if rows_inner:
        # grid = (nj, ni): weight slab resident across the whole row sweep.
        grid = (nj, ni)
        x_spec = pl.BlockSpec((tm, dim_in), lambda j, i: (i, 0))
        wv_spec = pl.BlockSpec((tn, dim_in), lambda j, i: (j, 0), **sb)
        wg_spec = pl.BlockSpec((tn, dim_in),
                               lambda j, i, o=gate_off: (j + o, 0), **sb)
        bv_spec = pl.BlockSpec((1, tn), lambda j, i: (0, j), **sb)
        bg_spec = pl.BlockSpec((1, tn), lambda j, i: (0, j), **sb)
        o_spec = pl.BlockSpec((tm, tn), lambda j, i: (i, j))
    else:
        # grid = (ni, nj): x tile resident across the whole column sweep.
        grid = (ni, nj)
        x_spec = pl.BlockSpec((tm, dim_in), lambda i, j: (i, 0), **sb)
        wv_spec = pl.BlockSpec((tn, dim_in), lambda i, j: (j, 0))
        wg_spec = pl.BlockSpec((tn, dim_in),
                               lambda i, j, o=gate_off: (j + o, 0))
        bv_spec = pl.BlockSpec((1, tn), lambda i, j: (0, j))
        bg_spec = pl.BlockSpec((1, tn), lambda i, j: (0, j))
        o_spec = pl.BlockSpec((tm, tn), lambda i, j: (i, j))

    x_es = jnp.dtype(xm.dtype).itemsize
    w_es = jnp.dtype(w.dtype).itemsize
    cost = pl.CostEstimate(
        flops=4 * Mp * dim_in * dim_out,          # two (Mp,dim_in)x(dim_in,dim_out) matmuls
        transcendentals=Mp * dim_out,             # erf per output element
        bytes_accessed=(Mp * dim_in * x_es
                        + 2 * dim_out * dim_in * w_es
                        + 2 * dim_out * w_es
                        + Mp * dim_out * x_es),
    )

    return pl.pallas_call(
        _geglu_kernel,
        out_shape=jax.ShapeDtypeStruct((Mp, dim_out), xm.dtype),
        grid_spec=pltpu.PrefetchScalarGridSpec(
            num_scalar_prefetch=0,
            grid=grid,
            in_specs=[x_spec, wv_spec, wg_spec, bv_spec, bg_spec],
            out_specs=o_spec,
        ),
        compiler_params=pltpu.CompilerParams(
            dimension_semantics=("parallel", "parallel"),
            vmem_limit_bytes=vmem_limit_bytes,
        ),
        cost_estimate=cost,
    )(xm, w, w, bv, bg)


def geglu_pallas(x, w, b, *, tm=512, tn=256,
                 vmem_limit_bytes=64 * 1024 * 1024):
    """GEGLU forward.

    x: (..., dim_in); w: (2*dim_out, dim_in) [PyTorch nn.Linear layout];
    b: (2*dim_out,).  Returns (..., dim_out).
    """
    *lead, dim_in = x.shape
    two_dim_out, dim_in_w = w.shape
    assert dim_in_w == dim_in, "weight / input feature mismatch"
    dim_out = two_dim_out // 2

    xm = x.reshape(-1, dim_in)
    M = xm.shape[0]

    # --- N (dim_out) tile: lane-aligned and dividing dim_out --------------
    tn = min(tn, dim_out)
    if dim_out % tn != 0:
        tn = 128 if dim_out % 128 == 0 else dim_out

    # --- M (row) tile: sublane-aligned -------------------------------------
    tm = min(tm, _round_up(M, 8))
    tm = _round_up(tm, 8)

    # --- shrink tiles if the (worst-case double-buffered) footprint would
    #     blow the scoped VMEM budget (large dim_in) -------------------------
    x_es = jnp.dtype(x.dtype).itemsize
    w_es = jnp.dtype(w.dtype).itemsize

    def footprint(tm_, tn_):
        return (2 * tm_ * dim_in * x_es          # x tiles (double buffered)
                + 2 * 2 * tn_ * dim_in * w_es    # value + gate weight slabs
                + 2 * tm_ * tn_ * x_es           # output tiles
                + 4 * tn_ * w_es)                # bias slabs

    budget = int(vmem_limit_bytes * 0.75)
    while footprint(tm, tn) > budget and tm > 8:
        tm = max(8, _round_up(tm // 2, 8))
    while (footprint(tm, tn) > budget and tn > 128
           and tn % 256 == 0 and dim_out % (tn // 2) == 0):
        tn //= 2

    Mp = _round_up(M, tm)
    if Mp != M:
        xm = jnp.pad(xm, ((0, Mp - M), (0, 0)))

    ni = Mp // tm
    nj = dim_out // tn

    # --- grid order: put on the outer axis whichever operand is cheaper to
    #     re-stream from HBM ------------------------------------------------
    x_bytes = Mp * dim_in * x_es
    w_bytes = two_dim_out * dim_in * w_es
    rows_inner = x_bytes * (nj - 1) <= w_bytes * (ni - 1)

    # Bias halves as (1, dim_out) rows (tiny; big weight stays untouched).
    bv = b[:dim_out].reshape(1, dim_out)
    bg = b[dim_out:].reshape(1, dim_out)

    kwargs = dict(tm=tm, tn=tn, rows_inner=rows_inner,
                  vmem_limit_bytes=vmem_limit_bytes)
    try:
        out = _geglu_call(xm, w, bv, bg, single_buffer=True, **kwargs)
    except Exception:
        # JAX build without BlockSpec pipeline_mode / pl.Buffered: fall back
        # to default (double) buffering for the grid-invariant slabs.
        out = _geglu_call(xm, w, bv, bg, single_buffer=False, **kwargs)

    if Mp != M:
        out = out[:M]
    return out.reshape(*lead, dim_out)


def geglu_reference(x, w, b):
    """Pure-JAX reference matching PyTorch GEGLU.forward (f32 math)."""
    proj = jnp.einsum("...d,od->...o", x, w,
                      precision=lax.Precision.HIGHEST) + b
    h, gate = jnp.split(proj, 2, axis=-1)
    return h * (0.5 * gate * (1.0 + lax.erf(gate / jnp.sqrt(2.0))))


if __name__ == "__main__":
    key = jax.random.PRNGKey(0)

    def make_params(k, dim_in, dim_out, dtype):
        kw, kb = jax.random.split(k)
        bound = 1.0 / (dim_in ** 0.5)
        w = jax.random.uniform(kw, (2 * dim_out, dim_in), jnp.float32,
                               -bound, bound).astype(dtype)
        b = jax.random.uniform(kb, (2 * dim_out,), jnp.float32,
                               -bound, bound).astype(dtype)
        return w, b

    # --- test 1: f32, small shapes (B=2, S=8, dim_in=32, dim_out=32) -----
    B, S, dim_in, dim_out = 2, 8, 32, 32
    k1, k2, k3 = jax.random.split(key, 3)
    x = jax.random.normal(k1, (B, S, dim_in), jnp.float32)
    w, b = make_params(k2, dim_in, dim_out, jnp.float32)
    out = jax.block_until_ready(geglu_pallas(x, w, b))
    ref = geglu_reference(x, w, b)
    assert out.shape == (B, S, dim_out)
    assert jnp.allclose(out, ref, atol=1e-5, rtol=1e-5), "f32 mismatch"

    # --- test 2: ragged row count (exercises the padded-tail path) -------
    B2, S2, din2, dout2 = 2, 13, 32, 64
    k4, k5, k6 = jax.random.split(k3, 3)
    x2 = jax.random.normal(k4, (B2, S2, din2), jnp.float32)
    w2, b2 = make_params(k5, din2, dout2, jnp.float32)
    out2 = jax.block_until_ready(geglu_pallas(x2, w2, b2))
    ref2 = geglu_reference(x2, w2, b2)
    assert out2.shape == (B2, S2, dout2)
    assert jnp.allclose(out2, ref2, atol=1e-5, rtol=1e-5), "ragged mismatch"

    # --- test 3: bf16 operands straight to the MXU (f32 accumulation) ----
    xb, wb, bb = (a.astype(jnp.bfloat16) for a in (x, w, b))
    outb = jax.block_until_ready(geglu_pallas(xb, wb, bb))
    refb = geglu_reference(xb.astype(jnp.float32), wb.astype(jnp.float32),
                           bb.astype(jnp.float32))
    assert outb.dtype == jnp.bfloat16
    assert jnp.allclose(outb.astype(jnp.float32), refb,
                        atol=5e-2, rtol=5e-2), "bf16 mismatch"

    # --- test 4: multi-tile grid (exercises both grid axes + padding) ----
    B4, S4, din4, dout4 = 2, 320, 64, 512
    k7, k8 = jax.random.split(k6)
    x4 = jax.random.normal(k7, (B4, S4, din4), jnp.float32)
    w4, b4 = make_params(k8, din4, dout4, jnp.float32)
    out4 = jax.block_until_ready(geglu_pallas(x4, w4, b4))
    ref4 = geglu_reference(x4, w4, b4)
    assert out4.shape == (B4, S4, dout4)
    assert jnp.allclose(out4, ref4, atol=1e-4, rtol=1e-4), "multi-tile mismatch"

    print("KERNEL_OK")
</pallas_src>

<mosaic_0001>
module attributes {stable_mosaic.version = 11 : i64} {
  func.func @_geglu_kernel(%arg0: i32, %arg1: i32, %arg2: memref<16x32xf32, #tpu.memory_space<vmem>>, %arg3: memref<32x32xf32, #tpu.memory_space<vmem>>, %arg4: memref<32x32xf32, #tpu.memory_space<vmem>>, %arg5: memref<1x32xf32, #tpu.memory_space<vmem>>, %arg6: memref<1x32xf32, #tpu.memory_space<vmem>>, %arg7: memref<16x32xf32, #tpu.memory_space<vmem>>) attributes {dimension_semantics = [#tpu.dimension_semantics<parallel>, #tpu.dimension_semantics<parallel>], iteration_bounds = array<i64: 1, 1>, scalar_prefetch = 0 : i64, scratch_operands = 0 : i64, tpu.core_type = #tpu.core_type<tc>, window_params = [{transform_indices = @transform_0, window_bounds = array<i64: 16, 32>}, {pipeline_mode = #tpu.pipeline_mode<synchronous>, transform_indices = @transform_1, window_bounds = array<i64: 32, 32>}, {pipeline_mode = #tpu.pipeline_mode<synchronous>, transform_indices = @transform_2, window_bounds = array<i64: 32, 32>}, {pipeline_mode = #tpu.pipeline_mode<synchronous>, transform_indices = @transform_3, window_bounds = array<i64: 1, 32>}, {pipeline_mode = #tpu.pipeline_mode<synchronous>, transform_indices = @transform_4, window_bounds = array<i64: 1, 32>}, {transform_indices = @transform_5, window_bounds = array<i64: 16, 32>}]} {
    %c0 = arith.constant 0 : index
    %c0_0 = arith.constant 0 : index
    %0 = vector.load %arg2[%c0, %c0_0] : memref<16x32xf32, #tpu.memory_space<vmem>>, vector<16x32xf32>
    %c0_1 = arith.constant 0 : index
    %c0_2 = arith.constant 0 : index
    %1 = vector.load %arg3[%c0_1, %c0_2] : memref<32x32xf32, #tpu.memory_space<vmem>>, vector<32x32xf32>
    %cst = arith.constant dense<0.000000e+00> : vector<16x32xf32>
    %2 = tpu.matmul %0, %1, %cst {dimension_numbers = #tpu.dot_dimension_numbers<[1], [1], [0], [0], [0, 0, 1, 0], [], []>} : vector<16x32xf32>, vector<32x32xf32>, vector<16x32xf32> -> vector<16x32xf32>
    %c0_3 = arith.constant 0 : index
    %c0_4 = arith.constant 0 : index
    %3 = vector.load %arg4[%c0_3, %c0_4] : memref<32x32xf32, #tpu.memory_space<vmem>>, vector<32x32xf32>
    %cst_5 = arith.constant dense<0.000000e+00> : vector<16x32xf32>
    %4 = tpu.matmul %0, %3, %cst_5 {dimension_numbers = #tpu.dot_dimension_numbers<[1], [1], [0], [0], [0, 0, 1, 0], [], []>} : vector<16x32xf32>, vector<32x32xf32>, vector<16x32xf32> -> vector<16x32xf32>
    %c0_6 = arith.constant 0 : index
    %c0_7 = arith.constant 0 : index
    %5 = vector.load %arg5[%c0_6, %c0_7] : memref<1x32xf32, #tpu.memory_space<vmem>>, vector<1x32xf32>
    %6 = vector.broadcast %5 : vector<1x32xf32> to vector<16x32xf32>
    %7 = arith.addf %2, %6 : vector<16x32xf32>
    %c0_8 = arith.constant 0 : index
    %c0_9 = arith.constant 0 : index
    %8 = vector.load %arg6[%c0_8, %c0_9] : memref<1x32xf32, #tpu.memory_space<vmem>>, vector<1x32xf32>
    %9 = vector.broadcast %8 : vector<1x32xf32> to vector<16x32xf32>
    %10 = arith.addf %4, %9 : vector<16x32xf32>
    %cst_10 = arith.constant 5.000000e-01 : f32
    %11 = vector.broadcast %cst_10 : f32 to vector<16x32xf32>
    %12 = arith.mulf %11, %10 : vector<16x32xf32>
    %cst_11 = arith.constant 0.707106769 : f32
    %13 = vector.broadcast %cst_11 : f32 to vector<16x32xf32>
    %14 = arith.mulf %10, %13 : vector<16x32xf32>
    %15 = math.erf %14 : vector<16x32xf32>
    %cst_12 = arith.constant 1.000000e+00 : f32
    %16 = vector.broadcast %cst_12 : f32 to vector<16x32xf32>
    %17 = arith.addf %16, %15 : vector<16x32xf32>
    %18 = arith.mulf %12, %17 : vector<16x32xf32>
    %19 = arith.mulf %7, %18 : vector<16x32xf32>
    %c0_13 = arith.constant 0 : index
    %c0_14 = arith.constant 0 : index
    %20 = vector.load %arg7[%c0_13, %c0_14] : memref<16x32xf32, #tpu.memory_space<vmem>>, vector<16x32xf32>
    tpu.vector_store %arg7[%c0_13, %c0_14], %19 {strides = array<i32>} : memref<16x32xf32, #tpu.memory_space<vmem>>, vector<16x32xf32>,
    return
  }
  func.func @transform_0(%arg0: i32, %arg1: i32) -> (i32, i32) {
    %c0_i32 = arith.constant 0 : i32
    %c0_i32_0 = arith.constant 0 : i32
    return %arg1, %c0_i32 : i32, i32
  }
  func.func @transform_1(%arg0: i32, %arg1: i32) -> (i32, i32) {
    %c0_i32 = arith.constant 0 : i32
    %c0_i32_0 = arith.constant 0 : i32
    return %arg0, %c0_i32 : i32, i32
  }
  func.func @transform_2(%arg0: i32, %arg1: i32) -> (i32, i32) {
    %c1_i32 = arith.constant 1 : i32
    %0 = arith.addi %arg0, %c1_i32 : i32
    %c0_i32 = arith.constant 0 : i32
    %c0_i32_0 = arith.constant 0 : i32
    return %0, %c0_i32 : i32, i32
  }
  func.func @transform_3(%arg0: i32, %arg1: i32) -> (i32, i32) {
    %c0_i32 = arith.constant 0 : i32
    %c0_i32_0 = arith.constant 0 : i32
    return %c0_i32, %arg0 : i32, i32
  }
  func.func @transform_4(%arg0: i32, %arg1: i32) -> (i32, i32) {
    %c0_i32 = arith.constant 0 : i32
    %c0_i32_0 = arith.constant 0 : i32
    return %c0_i32, %arg0 : i32, i32
  }
  func.func @transform_5(%arg0: i32, %arg1: i32) -> (i32, i32) {
    %c0_i32 = arith.constant 0 : i32
    return %arg1, %arg0 : i32, i32
  }
}

module attributes {stable_mosaic.version = 11 : i64} {
  func.func @_geglu_kernel(%arg0: i32, %arg1: i32, %arg2: memref<16x32xf32, #tpu.memory_space<vmem>>, %arg3: memref<32x32xf32, #tpu.memory_space<vmem>>, %arg4: memref<32x32xf32, #tpu.memory_space<vmem>>, %arg5: memref<1x32xf32, #tpu.memory_space<vmem>>, %arg6: memref<1x32xf32, #tpu.memory_space<vmem>>, %arg7: memref<16x32xf32, #tpu.memory_space<vmem>>) attributes {dimension_semantics = [#tpu.dimension_semantics<parallel>, #tpu.dimension_semantics<parallel>], iteration_bounds = array<i64: 1, 1>, scalar_prefetch = 0 : i64, scratch_operands = 0 : i64, tpu.core_type = #tpu.core_type<tc>, window_params = [{transform_indices = @transform_0, window_bounds = array<i64: 16, 32>}, {transform_indices = @transform_1, window_bounds = array<i64: 32, 32>}, {transform_indices = @transform_2, window_bounds = array<i64: 32, 32>}, {transform_indices = @transform_3, window_bounds = array<i64: 1, 32>}, {transform_indices = @transform_4, window_bounds = array<i64: 1, 32>}, {transform_indices = @transform_5, window_bounds = array<i64: 16, 32>}]} {
    %c0 = arith.constant 0 : index
    %c0_0 = arith.constant 0 : index
    %0 = vector.load %arg2[%c0, %c0_0] : memref<16x32xf32, #tpu.memory_space<vmem>>, vector<16x32xf32>
    %c0_1 = arith.constant 0 : index
    %c0_2 = arith.constant 0 : index
    %1 = vector.load %arg3[%c0_1, %c0_2] : memref<32x32xf32, #tpu.memory_space<vmem>>, vector<32x32xf32>
    %cst = arith.constant dense<0.000000e+00> : vector<16x32xf32>
    %2 = tpu.matmul %0, %1, %cst {dimension_numbers = #tpu.dot_dimension_numbers<[1], [1], [0], [0], [0, 0, 1, 0], [], []>} : vector<16x32xf32>, vector<32x32xf32>, vector<16x32xf32> -> vector<16x32xf32>
    %c0_3 = arith.constant 0 : index
    %c0_4 = arith.constant 0 : index
    %3 = vector.load %arg4[%c0_3, %c0_4] : memref<32x32xf32, #tpu.memory_space<vmem>>, vector<32x32xf32>
    %cst_5 = arith.constant dense<0.000000e+00> : vector<16x32xf32>
    %4 = tpu.matmul %0, %3, %cst_5 {dimension_numbers = #tpu.dot_dimension_numbers<[1], [1], [0], [0], [0, 0, 1, 0], [], []>} : vector<16x32xf32>, vector<32x32xf32>, vector<16x32xf32> -> vector<16x32xf32>
    %c0_6 = arith.constant 0 : index
    %c0_7 = arith.constant 0 : index
    %5 = vector.load %arg5[%c0_6, %c0_7] : memref<1x32xf32, #tpu.memory_space<vmem>>, vector<1x32xf32>
    %6 = vector.broadcast %5 : vector<1x32xf32> to vector<16x32xf32>
    %7 = arith.addf %2, %6 : vector<16x32xf32>
    %c0_8 = arith.constant 0 : index
    %c0_9 = arith.constant 0 : index
    %8 = vector.load %arg6[%c0_8, %c0_9] : memref<1x32xf32, #tpu.memory_space<vmem>>, vector<1x32xf32>
    %9 = vector.broadcast %8 : vector<1x32xf32> to vector<16x32xf32>
    %10 = arith.addf %4, %9 : vector<16x32xf32>
    %cst_10 = arith.constant 5.000000e-01 : f32
    %11 = vector.broadcast %cst_10 : f32 to vector<16x32xf32>
    %12 = arith.mulf %11, %10 : vector<16x32xf32>
    %cst_11 = arith.constant 0.707106769 : f32
    %13 = vector.broadcast %cst_11 : f32 to vector<16x32xf32>
    %14 = arith.mulf %10, %13 : vector<16x32xf32>
    %15 = math.erf %14 : vector<16x32xf32>
    %cst_12 = arith.constant 1.000000e+00 : f32
    %16 = vector.broadcast %cst_12 : f32 to vector<16x32xf32>
    %17 = arith.addf %16, %15 : vector<16x32xf32>
    %18 = arith.mulf %12, %17 : vector<16x32xf32>
    %19 = arith.mulf %7, %18 : vector<16x32xf32>
    %c0_13 = arith.constant 0 : index
    %c0_14 = arith.constant 0 : index
    %20 = vector.load %arg7[%c0_13, %c0_14] : memref<16x32xf32, #tpu.memory_space<vmem>>, vector<16x32xf32>
    tpu.vector_store %arg7[%c0_13, %c0_14], %19 {strides = array<i32>} : memref<16x32xf32, #tpu.memory_space<vmem>>, vector<16x32xf32>,
    return
  }
  func.func @transform_0(%arg0: i32, %arg1: i32) -> (i32, i32) {
    %c0_i32 = arith.constant 0 : i32
    %c0_i32_0 = arith.constant 0 : i32
    return %arg1, %c0_i32 : i32, i32
  }
  func.func @transform_1(%arg0: i32, %arg1: i32) -> (i32, i32) {
    %c0_i32 = arith.constant 0 : i32
    %c0_i32_0 = arith.constant 0 : i32
    return %arg0, %c0_i32 : i32, i32
  }
  func.func @transform_2(%arg0: i32, %arg1: i32) -> (i32, i32) {
    %c1_i32 = arith.constant 1 : i32
    %0 = arith.addi %arg0, %c1_i32 : i32
    %c0_i32 = arith.constant 0 : i32
    %c0_i32_0 = arith.constant 0 : i32
    return %0, %c0_i32 : i32, i32
  }
  func.func @transform_3(%arg0: i32, %arg1: i32) -> (i32, i32) {
    %c0_i32 = arith.constant 0 : i32
    %c0_i32_0 = arith.constant 0 : i32
    return %c0_i32, %arg0 : i32, i32
  }
  func.func @transform_4(%arg0: i32, %arg1: i32) -> (i32, i32) {
    %c0_i32 = arith.constant 0 : i32
    %c0_i32_0 = arith.constant 0 : i32
    return %c0_i32, %arg0 : i32, i32
  }
  func.func @transform_5(%arg0: i32, %arg1: i32) -> (i32, i32) {
    %c0_i32 = arith.constant 0 : i32
    return %arg1, %arg0 : i32, i32
  }
}

</mosaic_0001>

<llo_original>
// kernel: _geglu_call.1
$region0: #{_geglu_call.1}
  #allocation0 [shape = 'u32[]', space=smem, size = 0x4, offset = 0x4, fixed_abs, tag = 'smem constant byte address 0x4 - core index']
  #allocation1 [shape = 'u32[144,128]{1,0:T(1,128)}', space=vmem, size = 0x12000, scoped, tag = 'internal scratch']
  %s0 = inlined_call_operand.hbm [shape: f32[16,32], index: 0, kind: input, shape index: {}]
  %s1 = inlined_call_operand.hbm [shape: f32[64,32], index: 1, kind: input, shape index: {}, may-alias: {1,2}]
  %s2 = inlined_call_operand.hbm [shape: f32[64,32], index: 2, kind: input, shape index: {}, may-alias: {1,2}]
  %s3 = inlined_call_operand.hbm [shape: f32[1,32], index: 3, kind: input, shape index: {}]
  %s4 = inlined_call_operand.hbm [shape: f32[1,32], index: 4, kind: input, shape index: {}]
  %s5 = inlined_call_operand.hbm [shape: f32[16,32], index: 5, kind: output, shape index: {}]
  %s6 = sld [smem:[#allocation0]]
  $region50: #{_geglu_call.1} parent=0
    _
  %s8 = ssub.s32 1, %s6
  %s9 = scalar_select 0, %s8, %s6
  $region1: #{_geglu_call.1} parent=0
    #allocation2 [shape = 'u8[8192]{0}', space=vmem, size = 0x2000, scoped, tag = 'input window, operand 0, single buffered']
    #allocation3 [shape = 's32[1]{0}', space=sflag, size = 0x4, scoped, tag = 'scoped memory for _geglu_call.1']
    #allocation4 [shape = 's32[1]{0}', space=sflag, size = 0x4, scoped, tag = 'scoped memory for _geglu_call.1']
    #allocation5 [shape = 'u8[16384]{0}', space=vmem, size = 0x4000, scoped, tag = 'input window, operand 1, single buffered']
    #allocation6 [shape = 's32[1]{0}', space=sflag, size = 0x4, scoped, tag = 'scoped memory for _geglu_call.1']
    #allocation7 [shape = 'u8[16384]{0}', space=vmem, size = 0x4000, scoped, tag = 'input window, operand 2, single buffered']
    #allocation8 [shape = 'u8[512]{0}', space=vmem, size = 0x400, scoped, tag = 'input window, operand 3, single buffered']
    #allocation9 [shape = 's32[1]{0}', space=sflag, size = 0x4, scoped, tag = 'scoped memory for _geglu_call.1']
    #allocation10 [shape = 'u8[512]{0}', space=vmem, size = 0x400, scoped, tag = 'input window, operand 4, single buffered']
    #allocation11 [shape = 'u8[8192]{0}', space=vmem, size = 0x2000, scoped, tag = 'output window, operand 0, single buffered']
    %10 = vsyncpa [#allocation3], 0
    %11 = vsyncpa [#allocation6], 0
    %12 = vsyncpa [#allocation9], 0
    %13 = vsyncpa [#allocation4], 0
    // Predicated region
    $region2: #{_geglu_call.1} parent=1 // pred_check
      _
    $region3: #{_geglu_call.1} parent=1 // pred_check_branch
      %15 = sbr.rel (0) target = $region5
    $region4: #{_geglu_call.1} parent=1 // pred_region
      %s17 = ssub.s32 256, 256
      %18 = vsyncadd [#allocation3], %s17
      %s19 = sshll.u32 [#allocation2], 4
      %s20 = int_to_ptr.vmem [resolvable:$true] %s19
      %25 = dma.hbm_to_vmem [thread:$0]  %s0, 256, %s20, [#allocation3], 128, 128, 8
    $region5: #{_geglu_call.1} parent=1 // pred_fallthru
      _
    // Predicated region
    $region6: #{_geglu_call.1} parent=1 // pred_check
      _
    $region7: #{_geglu_call.1} parent=1 // pred_check_branch
      %27 = sbr.rel (0) target = $region9
    $region8: #{_geglu_call.1} parent=1 // pred_region
      %s29 = ssub.s32 512, 512
      %30 = vsyncadd [#allocation6], %s29
      %s31 = sshll.u32 [#allocation5], 4
      %s32 = int_to_ptr.vmem [resolvable:$true] %s31
      %37 = dma.hbm_to_vmem [thread:$0]  %s1, 512, %s32, [#allocation6], 128, 128, 8
    $region9: #{_geglu_call.1} parent=1 // pred_fallthru
      _
    // Predicated region
    $region10: #{_geglu_call.1} parent=1 // pred_check
      _
    $region11: #{_geglu_call.1} parent=1 // pred_check_branch
      %39 = sbr.rel (0) target = $region13
    $region12: #{_geglu_call.1} parent=1 // pred_region
      %s40 = sadd.s32 0, 1
      %s41 = smul.u32 4, %s40
      %s43 = ssub.s32 512, 512
      %44 = vsyncadd [#allocation6], %s43
      %s45 = smul.addr %s41, 128
      %s46 = scalar_lea.hbm %s2, %s45
      %s47 = sshll.u32 [#allocation7], 4
      %s48 = int_to_ptr.vmem [resolvable:$true] %s47
      %53 = dma.hbm_to_vmem [thread:$0]  %s46, 512, %s48, [#allocation6], 128, 128, 8
    $region13: #{_geglu_call.1} parent=1 // pred_fallthru
      _
    // Predicated region
    $region14: #{_geglu_call.1} parent=1 // pred_check
      _
    $region15: #{_geglu_call.1} parent=1 // pred_check_branch
      %55 = sbr.rel (0) target = $region17
    $region16: #{_geglu_call.1} parent=1 // pred_region
      %s57 = ssub.s32 16, 16
      %58 = vsyncadd [#allocation9], %s57
      %s60 = sshll.u32 [#allocation8], 4
      %s61 = int_to_ptr.vmem [resolvable:$true] %s60
      %63 = dma.hbm_to_vmem [thread:$0]  %s3, 16, %s61, [#allocation9]
    $region17: #{_geglu_call.1} parent=1 // pred_fallthru
      _
    // Predicated region
    $region18: #{_geglu_call.1} parent=1 // pred_check
      _
    $region19: #{_geglu_call.1} parent=1 // pred_check_branch
      %65 = sbr.rel (0) target = $region21
    $region20: #{_geglu_call.1} parent=1 // pred_region
      %s67 = ssub.s32 16, 16
      %68 = vsyncadd [#allocation9], %s67
      %s70 = sshll.u32 [#allocation10], 4
      %s71 = int_to_ptr.vmem [resolvable:$true] %s70
      %73 = dma.hbm_to_vmem [thread:$0]  %s4, 16, %s71, [#allocation9]
    $region21: #{_geglu_call.1} parent=1 // pred_fallthru
      _
    // Predicated region
    $region22: #{_geglu_call.1} parent=1 // pred_check
      _
    $region23: #{_geglu_call.1} parent=1 // pred_check_branch
      %75 = sbr.rel (0) target = $region25
    $region24: #{_geglu_call.1} parent=1 // pred_region
      %76 = dma.done [#allocation3], 256
    $region25: #{_geglu_call.1} parent=1 // pred_fallthru
      _
    // Predicated region
    $region26: #{_geglu_call.1} parent=1 // pred_check
      _
    $region27: #{_geglu_call.1} parent=1 // pred_check_branch
      %78 = sbr.rel (0) target = $region29
    $region28: #{_geglu_call.1} parent=1 // pred_region
      %79 = dma.done [#allocation6], 512
    $region29: #{_geglu_call.1} parent=1 // pred_fallthru
      _
    // Predicated region
    $region30: #{_geglu_call.1} parent=1 // pred_check
      _
    $region31: #{_geglu_call.1} parent=1 // pred_check_branch
      %81 = sbr.rel (0) target = $region33
    $region32: #{_geglu_call.1} parent=1 // pred_region
      %82 = dma.done [#allocation6], 512
    $region33: #{_geglu_call.1} parent=1 // pred_fallthru
      _
    // Predicated region
    $region34: #{_geglu_call.1} parent=1 // pred_check
      _
    $region35: #{_geglu_call.1} parent=1 // pred_check_branch
      %84 = sbr.rel (0) target = $region37
    $region36: #{_geglu_call.1} parent=1 // pred_region
      %85 = dma.done [#allocation9], 16
    $region37: #{_geglu_call.1} parent=1 // pred_fallthru
      _
    // Predicated region
    $region38: #{_geglu_call.1} parent=1 // pred_check
      _
    $region39: #{_geglu_call.1} parent=1 // pred_check_branch
      %87 = sbr.rel (0) target = $region41
    $region40: #{_geglu_call.1} parent=1 // pred_region
      %88 = dma.done [#allocation9], 16
    $region41: #{_geglu_call.1} parent=1 // pred_fallthru
      _
    %s89 = sadd.s32 0, 1
    %s90 = smul.u32 4, %s89
    %v91 = vld [vmem:[#allocation2] sm:$0xff]
    %v92 = vld [vmem:[#allocation2 + $0x8] sm:$0xff]
    %v93 = vld [vmem:[#allocation5] sm:$0xff]
    %v94 = vld [vmem:[#allocation5 + $0x8] sm:$0xff]
    %v95 = vld [vmem:[#allocation5 + $0x10] sm:$0xff]
    %v96 = vld [vmem:[#allocation5 + $0x18] sm:$0xff]
    %v97 = vld [vmem:[#allocation7] sm:$0xff]
    %v98 = vld [vmem:[#allocation7 + $0x8] sm:$0xff]
    %v99 = vld [vmem:[#allocation7 + $0x10] sm:$0xff]
    %v100 = vld [vmem:[#allocation7 + $0x18] sm:$0xff]
    %v101 = vld [vmem:[#allocation8] sm:$0x1]
    %v103 = vlaneseq
    %v104 = vshrl.u32 %v103, 7
    %v105 = vsub.s32 0, %v104
    %v106 = vrot.slane %v101, %v105
    %vm108 = vcmask 261120
    %v110 = vsel %vm108, %v91, 0
    %v113 = vsel %vm108, %v92, 0
    %v116 = vsel %vm108, %v93, 0
    %v119 = vsel %vm108, %v94, 0
    %v122 = vsel %vm108, %v95, 0
    %v125 = vsel %vm108, %v96, 0
    %127 = vmatprep.subr.mxu0 0.0
    %128 = vmatpush1.xpose.msra.mxu0 %v116
    %129 = vmatprep.subr.mxu0 0.0
    %130 = vmatpush1.xpose.msra.mxu0 %v119
    %131 = vmatprep.subr.mxu0 0.0
    %132 = vmatpush1.xpose.msra.mxu0 %v122
    %133 = vmatprep.subr.mxu0 0.0
    %134 = vmatpush1.xpose.msra.mxu0 %v125
    %135 = vmatprep.subr.mxu0 0.0
    %136 = vmatpush1.xpose.msra.mxu0 0.0
    %137 = vmatprep.subr.mxu0 0.0
    %138 = vmatpush1.xpose.msra.mxu0 0.0
    %139 = vmatprep.subr.mxu0 0.0
    %140 = vmatpush1.xpose.msra.mxu0 0.0
    %141 = vmatprep.subr.mxu0 0.0
    %142 = vmatpush1.xpose.msra.mxu0 0.0
    %143 = vmatprep.subr.mxu0 0.0
    %144 = vmatpush1.xpose.msra.mxu0 0.0
    %145 = vmatprep.subr.mxu0 0.0
    %146 = vmatpush1.xpose.msra.mxu0 0.0
    %147 = vmatprep.subr.mxu0 0.0
    %148 = vmatpush1.xpose.msra.mxu0 0.0
    %149 = vmatprep.subr.mxu0 0.0
    %150 = vmatpush1.xpose.msra.mxu0 0.0
    %151 = vmatprep.subr.mxu0 0.0
    %152 = vmatpush1.xpose.msra.mxu0 0.0
    %153 = vmatprep.subr.mxu0 0.0
    %154 = vmatpush1.xpose.msra.mxu0 0.0
    %155 = vmatprep.subr.mxu0 0.0
    %156 = vmatpush1.xpose.msra.mxu0 0.0
    %157 = vmatprep.subr.mxu0 0.0
    %158 = vmatpush1.xpose.msra.mxu0 0.0
    %159 = vmatprep.subr.mxu0 0.0
    %160 = vmatpush1.xpose.msra.mxu0 0.0
    %161 = vmatprep.subr.mxu0 0.0
    %162 = vmatpush1.xpose.msra.mxu0 0.0
    %163 = vmatprep.subr.mxu0 0.0
    %164 = vmatpush1.xpose.msra.mxu0 0.0
    %165 = vmatprep.subr.mxu0 0.0
    %166 = vmatpush1.xpose.msra.mxu0 0.0
    %167 = vmatprep.subr.mxu0 0.0
    %168 = vmatpush1.xpose.msra.mxu0 0.0
    %169 = vmatprep.subr.mxu0 0.0
    %170 = vmatpush1.xpose.msra.mxu0 0.0
    %171 = vmatprep.subr.mxu0 0.0
    %172 = vmatpush1.xpose.msra.mxu0 0.0
    %173 = vmatprep.subr.mxu0 0.0
    %174 = vmatpush1.xpose.msra.mxu0 0.0
    %175 = vmatprep.subr.mxu0 0.0
    %176 = vmatpush1.xpose.msra.mxu0 0.0
    %177 = vmatprep.subr.mxu0 0.0
    %178 = vmatpush1.xpose.msra.mxu0 0.0
    %179 = vmatprep.subr.mxu0 0.0
    %180 = vmatpush1.xpose.msra.mxu0 0.0
    %181 = vmatprep.subr.mxu0 0.0
    %182 = vmatpush1.xpose.msra.mxu0 0.0
    %183 = vmatprep.subr.mxu0 0.0
    %184 = vmatpush1.xpose.msra.mxu0 0.0
    %185 = vmatprep.subr.mxu0 0.0
    %186 = vmatpush1.xpose.msra.mxu0 0.0
    %187 = vmatprep.subr.mxu0 0.0
    %188 = vmatpush1.xpose.msra.mxu0 0.0
    %189 = vmatprep.subr.mxu0 0.0
    %190 = vmatpush1.xpose.msra.mxu0 0.0
    %191 = vmatprep.mubr.f32.mxu0 0.0
    %192 = vmatmul.mubr.f32.gmra.mrb[0].mxu0 %v110
    %v193 = vpop.f32.mrb[0].mxu0
    %v194 = vadd.f32 %v106, %v193
    %v195 = vpop.f32.mrb[0].mxu0
    %196 = vmatprep.mubr.f32.mxu0 0.0
    %197 = vmatmul.mubr.f32.gmra.mrb[0].mxu0 %v113
    %v198 = vpop.f32.mrb[0].mxu0
    %v199 = vadd.f32 %v106, %v198
    %v200 = vpop.f32.mrb[0].mxu0
    %201 = vdwg.mxu0
    %v202 = vld [vmem:[#allocation10] sm:$0x1]
    %v204 = vlaneseq
    %v205 = vshrl.u32 %v204, 7
    %v206 = vsub.s32 0, %v205
    %v207 = vrot.slane %v202, %v206
    %v210 = vsel %vm108, %v97, 0
    %v213 = vsel %vm108, %v98, 0
    %v216 = vsel %vm108, %v99, 0
    %v219 = vsel %vm108, %v100, 0
    %221 = vmatprep.subr.mxu0 0.0
    %222 = vmatpush1.xpose.msra.mxu0 %v210
    %223 = vmatprep.subr.mxu0 0.0
    %224 = vmatpush1.xpose.msra.mxu0 %v213
    %225 = vmatprep.subr.mxu0 0.0
    %226 = vmatpush1.xpose.msra.mxu0 %v216
    %227 = vmatprep.subr.mxu0 0.0
    %228 = vmatpush1.xpose.msra.mxu0 %v219
    %229 = vmatprep.subr.mxu0 0.0
    %230 = vmatpush1.xpose.msra.mxu0 0.0
    %231 = vmatprep.subr.mxu0 0.0
    %232 = vmatpush1.xpose.msra.mxu0 0.0
    %233 = vmatprep.subr.mxu0 0.0
    %234 = vmatpush1.xpose.msra.mxu0 0.0
    %235 = vmatprep.subr.mxu0 0.0
    %236 = vmatpush1.xpose.msra.mxu0 0.0
    %237 = vmatprep.subr.mxu0 0.0
    %238 = vmatpush1.xpose.msra.mxu0 0.0
    %239 = vmatprep.subr.mxu0 0.0
    %240 = vmatpush1.xpose.msra.mxu0 0.0
    %241 = vmatprep.subr.mxu0 0.0
    %242 = vmatpush1.xpose.msra.mxu0 0.0
    %243 = vmatprep.subr.mxu0 0.0
    %244 = vmatpush1.xpose.msra.mxu0 0.0
    %245 = vmatprep.subr.mxu0 0.0
    %246 = vmatpush1.xpose.msra.mxu0 0.0
    %247 = vmatprep.subr.mxu0 0.0
    %248 = vmatpush1.xpose.msra.mxu0 0.0
    %249 = vmatprep.subr.mxu0 0.0
    %250 = vmatpush1.xpose.msra.mxu0 0.0
    %251 = vmatprep.subr.mxu0 0.0
    %252 = vmatpush1.xpose.msra.mxu0 0.0
    %253 = vmatprep.subr.mxu0 0.0
    %254 = vmatpush1.xpose.msra.mxu0 0.0
    %255 = vmatprep.subr.mxu0 0.0
    %256 = vmatpush1.xpose.msra.mxu0 0.0
    %257 = vmatprep.subr.mxu0 0.0
    %258 = vmatpush1.xpose.msra.mxu0 0.0
    %259 = vmatprep.subr.mxu0 0.0
    %260 = vmatpush1.xpose.msra.mxu0 0.0
    %261 = vmatprep.subr.mxu0 0.0
    %262 = vmatpush1.xpose.msra.mxu0 0.0
    %263 = vmatprep.subr.mxu0 0.0
    %264 = vmatpush1.xpose.msra.mxu0 0.0
    %265 = vmatprep.subr.mxu0 0.0
    %266 = vmatpush1.xpose.msra.mxu0 0.0
    %267 = vmatprep.subr.mxu0 0.0
    %268 = vmatpush1.xpose.msra.mxu0 0.0
    %269 = vmatprep.subr.mxu0 0.0
    %270 = vmatpush1.xpose.msra.mxu0 0.0
    %271 = vmatprep.subr.mxu0 0.0
    %272 = vmatpush1.xpose.msra.mxu0 0.0
    %273 = vmatprep.subr.mxu0 0.0
    %274 = vmatpush1.xpose.msra.mxu0 0.0
    %275 = vmatprep.subr.mxu0 0.0
    %276 = vmatpush1.xpose.msra.mxu0 0.0
    %277 = vmatprep.subr.mxu0 0.0
    %278 = vmatpush1.xpose.msra.mxu0 0.0
    %279 = vmatprep.subr.mxu0 0.0
    %280 = vmatpush1.xpose.msra.mxu0 0.0
    %281 = vmatprep.subr.mxu0 0.0
    %282 = vmatpush1.xpose.msra.mxu0 0.0
    %283 = vmatprep.subr.mxu0 0.0
    %284 = vmatpush1.xpose.msra.mxu0 0.0
    %285 = vmatprep.mubr.f32.mxu0 0.0
    %286 = vmatmul.mubr.f32.gmra.mrb[0].mxu0 %v110
    %v287 = vpop.f32.mrb[0].mxu0
    %v288 = vadd.f32 %v207, %v287
    %v289 = vpop.f32.mrb[0].mxu0
    %290 = vmatprep.mubr.f32.mxu0 0.0
    %291 = vmatmul.mubr.f32.gmra.mrb[0].mxu0 %v113
    %v292 = vpop.f32.mrb[0].mxu0
    %v293 = vadd.f32 %v207, %v292
    %v294 = vpop.f32.mrb[0].mxu0
    %295 = vdwg.mxu0
    %v296 = vmul.f32 %v288, 0.5
    %v297 = vmul.f32 %v293, 0.5
    %v298 = vmul.f32 %v288, 0.70710677
    %v299 = vmul.f32 %v293, 0.70710677
    %v300 = verf.f32.pop %v298
    %v301 = verf.f32.pop %v299
    %v302 = vadd.f32 %v300, 1.0
    %v303 = vadd.f32 %v301, 1.0
    %v304 = vmul.f32 %v296, %v302
    %v305 = vmul.f32 %v297, %v303
    %v306 = vmul.f32 %v194, %v304
    %v307 = vmul.f32 %v199, %v305
    %308 = vst.msk [vmem:[#allocation11] sm:$0xff] %vm108, %v306
    %309 = vst.msk [vmem:[#allocation11 + $0x8] sm:$0xff] %vm108, %v307
    // Predicated region
    $region42: #{_geglu_call.1} parent=1 // pred_check
      _
    $region43: #{_geglu_call.1} parent=1 // pred_check_branch
      %311 = sbr.rel (0) target = $region45
    $region44: #{_geglu_call.1} parent=1 // pred_region
      %s313 = ssub.s32 256, 256
      %314 = vsyncadd [#allocation4], %s313
      %s315 = sshll.u32 [#allocation11], 4
      %s316 = int_to_ptr.vmem [resolvable:$true] %s315
      %321 = dma.vmem_to_hbm [thread:$0]  %s316, 256, %s5, [#allocation4], 128, 128, 8
    $region45: #{_geglu_call.1} parent=1 // pred_fallthru
      _
    // Predicated region
    $region46: #{_geglu_call.1} parent=1 // pred_check
      _
    $region47: #{_geglu_call.1} parent=1 // pred_check_branch
      %323 = sbr.rel (0) target = $region49
    $region48: #{_geglu_call.1} parent=1 // pred_region
      %324 = dma.done [#allocation4], 256
    $region49: #{_geglu_call.1} parent=1 // pred_fallthru
      _
    %325 = vsyncpa [#allocation3], 1
    %326 = vsyncpa [#allocation6], 1
    %327 = vsyncpa [#allocation9], 1
    %328 = vsyncpa [#allocation4], 1

// kernel: _geglu_call.1
$region0: #{_geglu_call.1}
  #allocation0 [shape = 'u32[]', space=smem, size = 0x4, offset = 0x4, fixed_abs, tag = 'smem constant byte address 0x4 - core index']
  #allocation1 [shape = 'u32[144,128]{1,0:T(1,128)}', space=vmem, size = 0x12000, scoped, tag = 'internal scratch']
  %s0 = inlined_call_operand.hbm [shape: f32[16,32], index: 0, kind: input, shape index: {}]
  %s1 = inlined_call_operand.hbm [shape: f32[64,32], index: 1, kind: input, shape index: {}, may-alias: {1,2}]
  %s2 = inlined_call_operand.hbm [shape: f32[64,32], index: 2, kind: input, shape index: {}, may-alias: {1,2}]
  %s3 = inlined_call_operand.hbm [shape: f32[1,32], index: 3, kind: input, shape index: {}]
  %s4 = inlined_call_operand.hbm [shape: f32[1,32], index: 4, kind: input, shape index: {}]
  %s5 = inlined_call_operand.hbm [shape: f32[16,32], index: 5, kind: output, shape index: {}]
  %s6 = sld [smem:[#allocation0]]
  $region50: #{_geglu_call.1} parent=0
    _
  %s8 = ssub.s32 1, %s6
  %s9 = scalar_select 0, %s8, %s6
  $region1: #{_geglu_call.1} parent=0
    #allocation2 [shape = 'u8[8192]{0}', space=vmem, size = 0x2000, scoped, tag = 'input window, operand 0, single buffered']
    #allocation3 [shape = 's32[1]{0}', space=sflag, size = 0x4, scoped, tag = 'scoped memory for _geglu_call.1']
    #allocation4 [shape = 's32[1]{0}', space=sflag, size = 0x4, scoped, tag = 'scoped memory for _geglu_call.1']
    #allocation5 [shape = 'u8[16384]{0}', space=vmem, size = 0x4000, scoped, tag = 'input window, operand 1, single buffered']
    #allocation6 [shape = 's32[1]{0}', space=sflag, size = 0x4, scoped, tag = 'scoped memory for _geglu_call.1']
    #allocation7 [shape = 'u8[16384]{0}', space=vmem, size = 0x4000, scoped, tag = 'input window, operand 2, single buffered']
    #allocation8 [shape = 'u8[512]{0}', space=vmem, size = 0x400, scoped, tag = 'input window, operand 3, single buffered']
    #allocation9 [shape = 's32[1]{0}', space=sflag, size = 0x4, scoped, tag = 'scoped memory for _geglu_call.1']
    #allocation10 [shape = 'u8[512]{0}', space=vmem, size = 0x400, scoped, tag = 'input window, operand 4, single buffered']
    #allocation11 [shape = 'u8[8192]{0}', space=vmem, size = 0x2000, scoped, tag = 'output window, operand 0, single buffered']
    %10 = vsyncpa [#allocation3], 0
    %11 = vsyncpa [#allocation6], 0
    %12 = vsyncpa [#allocation9], 0
    %13 = vsyncpa [#allocation4], 0
    // Predicated region
    $region2: #{_geglu_call.1} parent=1 // pred_check
      _
    $region3: #{_geglu_call.1} parent=1 // pred_check_branch
      %15 = sbr.rel (0) target = $region5
    $region4: #{_geglu_call.1} parent=1 // pred_region
      %s17 = ssub.s32 256, 256
      %18 = vsyncadd [#allocation3], %s17
      %s19 = sshll.u32 [#allocation2], 4
      %s20 = int_to_ptr.vmem [resolvable:$true] %s19
      %25 = dma.hbm_to_vmem [thread:$0]  %s0, 256, %s20, [#allocation3], 128, 128, 8
    $region5: #{_geglu_call.1} parent=1 // pred_fallthru
      _
    // Predicated region
    $region6: #{_geglu_call.1} parent=1 // pred_check
      _
    $region7: #{_geglu_call.1} parent=1 // pred_check_branch
      %27 = sbr.rel (0) target = $region9
    $region8: #{_geglu_call.1} parent=1 // pred_region
      %s29 = ssub.s32 512, 512
      %30 = vsyncadd [#allocation6], %s29
      %s31 = sshll.u32 [#allocation5], 4
      %s32 = int_to_ptr.vmem [resolvable:$true] %s31
      %37 = dma.hbm_to_vmem [thread:$0]  %s1, 512, %s32, [#allocation6], 128, 128, 8
    $region9: #{_geglu_call.1} parent=1 // pred_fallthru
      _
    // Predicated region
    $region10: #{_geglu_call.1} parent=1 // pred_check
      _
    $region11: #{_geglu_call.1} parent=1 // pred_check_branch
      %39 = sbr.rel (0) target = $region13
    $region12: #{_geglu_call.1} parent=1 // pred_region
      %s40 = sadd.s32 0, 1
      %s41 = smul.u32 4, %s40
      %s43 = ssub.s32 512, 512
      %44 = vsyncadd [#allocation6], %s43
      %s45 = smul.addr %s41, 128
      %s46 = scalar_lea.hbm %s2, %s45
      %s47 = sshll.u32 [#allocation7], 4
      %s48 = int_to_ptr.vmem [resolvable:$true] %s47
      %53 = dma.hbm_to_vmem [thread:$0]  %s46, 512, %s48, [#allocation6], 128, 128, 8
    $region13: #{_geglu_call.1} parent=1 // pred_fallthru
      _
    // Predicated region
    $region14: #{_geglu_call.1} parent=1 // pred_check
      _
    $region15: #{_geglu_call.1} parent=1 // pred_check_branch
      %55 = sbr.rel (0) target = $region17
    $region16: #{_geglu_call.1} parent=1 // pred_region
      %s57 = ssub.s32 16, 16
      %58 = vsyncadd [#allocation9], %s57
      %s60 = sshll.u32 [#allocation8], 4
      %s61 = int_to_ptr.vmem [resolvable:$true] %s60
      %63 = dma.hbm_to_vmem [thread:$0]  %s3, 16, %s61, [#allocation9]
    $region17: #{_geglu_call.1} parent=1 // pred_fallthru
      _
    // Predicated region
    $region18: #{_geglu_call.1} parent=1 // pred_check
      _
    $region19: #{_geglu_call.1} parent=1 // pred_check_branch
      %65 = sbr.rel (0) target = $region21
    $region20: #{_geglu_call.1} parent=1 // pred_region
      %s67 = ssub.s32 16, 16
      %68 = vsyncadd [#allocation9], %s67
      %s70 = sshll.u32 [#allocation10], 4
      %s71 = int_to_ptr.vmem [resolvable:$true] %s70
      %73 = dma.hbm_to_vmem [thread:$0]  %s4, 16, %s71, [#allocation9]
    $region21: #{_geglu_call.1} parent=1 // pred_fallthru
      _
    // Predicated region
    $region22: #{_geglu_call.1} parent=1 // pred_check
      _
    $region23: #{_geglu_call.1} parent=1 // pred_check_branch
      %75 = sbr.rel (0) target = $region25
    $region24: #{_geglu_call.1} parent=1 // pred_region
      %76 = dma.done [#allocation3], 256
    $region25: #{_geglu_call.1} parent=1 // pred_fallthru
      _
    // Predicated region
    $region26: #{_geglu_call.1} parent=1 // pred_check
      _
    $region27: #{_geglu_call.1} parent=1 // pred_check_branch
      %78 = sbr.rel (0) target = $region29
    $region28: #{_geglu_call.1} parent=1 // pred_region
      %79 = dma.done [#allocation6], 512
    $region29: #{_geglu_call.1} parent=1 // pred_fallthru
      _
    // Predicated region
    $region30: #{_geglu_call.1} parent=1 // pred_check
      _
    $region31: #{_geglu_call.1} parent=1 // pred_check_branch
      %81 = sbr.rel (0) target = $region33
    $region32: #{_geglu_call.1} parent=1 // pred_region
      %82 = dma.done [#allocation6], 512
    $region33: #{_geglu_call.1} parent=1 // pred_fallthru
      _
    // Predicated region
    $region34: #{_geglu_call.1} parent=1 // pred_check
      _
    $region35: #{_geglu_call.1} parent=1 // pred_check_branch
      %84 = sbr.rel (0) target = $region37
    $region36: #{_geglu_call.1} parent=1 // pred_region
      %85 = dma.done [#allocation9], 16
    $region37: #{_geglu_call.1} parent=1 // pred_fallthru
      _
    // Predicated region
    $region38: #{_geglu_call.1} parent=1 // pred_check
      _
    $region39: #{_geglu_call.1} parent=1 // pred_check_branch
      %87 = sbr.rel (0) target = $region41
    $region40: #{_geglu_call.1} parent=1 // pred_region
      %88 = dma.done [#allocation9], 16
    $region41: #{_geglu_call.1} parent=1 // pred_fallthru
      _
    %s89 = sadd.s32 0, 1
    %s90 = smul.u32 4, %s89
    %v91 = vld [vmem:[#allocation2] sm:$0xff]
    %v92 = vld [vmem:[#allocation2 + $0x8] sm:$0xff]
    %v93 = vld [vmem:[#allocation5] sm:$0xff]
    %v94 = vld [vmem:[#allocation5 + $0x8] sm:$0xff]
    %v95 = vld [vmem:[#allocation5 + $0x10] sm:$0xff]
    %v96 = vld [vmem:[#allocation5 + $0x18] sm:$0xff]
    %v97 = vld [vmem:[#allocation7] sm:$0xff]
    %v98 = vld [vmem:[#allocation7 + $0x8] sm:$0xff]
    %v99 = vld [vmem:[#allocation7 + $0x10] sm:$0xff]
    %v100 = vld [vmem:[#allocation7 + $0x18] sm:$0xff]
    %v101 = vld [vmem:[#allocation8] sm:$0x1]
    %v103 = vlaneseq
    %v104 = vshrl.u32 %v103, 7
    %v105 = vsub.s32 0, %v104
    %v106 = vrot.slane %v101, %v105
    %vm108 = vcmask 261120
    %v110 = vsel %vm108, %v91, 0
    %v113 = vsel %vm108, %v92, 0
    %v116 = vsel %vm108, %v93, 0
    %v119 = vsel %vm108, %v94, 0
    %v122 = vsel %vm108, %v95, 0
    %v125 = vsel %vm108, %v96, 0
    %127 = vmatprep.subr.mxu0 0.0
    %128 = vmatpush1.xpose.msra.mxu0 %v116
    %129 = vmatprep.subr.mxu0 0.0
    %130 = vmatpush1.xpose.msra.mxu0 %v119
    %131 = vmatprep.subr.mxu0 0.0
    %132 = vmatpush1.xpose.msra.mxu0 %v122
    %133 = vmatprep.subr.mxu0 0.0
    %134 = vmatpush1.xpose.msra.mxu0 %v125
    %135 = vmatprep.subr.mxu0 0.0
    %136 = vmatpush1.xpose.msra.mxu0 0.0
    %137 = vmatprep.subr.mxu0 0.0
    %138 = vmatpush1.xpose.msra.mxu0 0.0
    %139 = vmatprep.subr.mxu0 0.0
    %140 = vmatpush1.xpose.msra.mxu0 0.0
    %141 = vmatprep.subr.mxu0 0.0
    %142 = vmatpush1.xpose.msra.mxu0 0.0
    %143 = vmatprep.subr.mxu0 0.0
    %144 = vmatpush1.xpose.msra.mxu0 0.0
    %145 = vmatprep.subr.mxu0 0.0
    %146 = vmatpush1.xpose.msra.mxu0 0.0
    %147 = vmatprep.subr.mxu0 0.0
    %148 = vmatpush1.xpose.msra.mxu0 0.0
    %149 = vmatprep.subr.mxu0 0.0
    %150 = vmatpush1.xpose.msra.mxu0 0.0
    %151 = vmatprep.subr.mxu0 0.0
    %152 = vmatpush1.xpose.msra.mxu0 0.0
    %153 = vmatprep.subr.mxu0 0.0
    %154 = vmatpush1.xpose.msra.mxu0 0.0
    %155 = vmatprep.subr.mxu0 0.0
    %156 = vmatpush1.xpose.msra.mxu0 0.0
    %157 = vmatprep.subr.mxu0 0.0
    %158 = vmatpush1.xpose.msra.mxu0 0.0
    %159 = vmatprep.subr.mxu0 0.0
    %160 = vmatpush1.xpose.msra.mxu0 0.0
    %161 = vmatprep.subr.mxu0 0.0
    %162 = vmatpush1.xpose.msra.mxu0 0.0
    %163 = vmatprep.subr.mxu0 0.0
    %164 = vmatpush1.xpose.msra.mxu0 0.0
    %165 = vmatprep.subr.mxu0 0.0
    %166 = vmatpush1.xpose.msra.mxu0 0.0
    %167 = vmatprep.subr.mxu0 0.0
    %168 = vmatpush1.xpose.msra.mxu0 0.0
    %169 = vmatprep.subr.mxu0 0.0
    %170 = vmatpush1.xpose.msra.mxu0 0.0
    %171 = vmatprep.subr.mxu0 0.0
    %172 = vmatpush1.xpose.msra.mxu0 0.0
    %173 = vmatprep.subr.mxu0 0.0
    %174 = vmatpush1.xpose.msra.mxu0 0.0
    %175 = vmatprep.subr.mxu0 0.0
    %176 = vmatpush1.xpose.msra.mxu0 0.0
    %177 = vmatprep.subr.mxu0 0.0
    %178 = vmatpush1.xpose.msra.mxu0 0.0
    %179 = vmatprep.subr.mxu0 0.0
    %180 = vmatpush1.xpose.msra.mxu0 0.0
    %181 = vmatprep.subr.mxu0 0.0
    %182 = vmatpush1.xpose.msra.mxu0 0.0
    %183 = vmatprep.subr.mxu0 0.0
    %184 = vmatpush1.xpose.msra.mxu0 0.0
    %185 = vmatprep.subr.mxu0 0.0
    %186 = vmatpush1.xpose.msra.mxu0 0.0
    %187 = vmatprep.subr.mxu0 0.0
    %188 = vmatpush1.xpose.msra.mxu0 0.0
    %189 = vmatprep.subr.mxu0 0.0
    %190 = vmatpush1.xpose.msra.mxu0 0.0
    %191 = vmatprep.mubr.f32.mxu0 0.0
    %192 = vmatmul.mubr.f32.gmra.mrb[0].mxu0 %v110
    %v193 = vpop.f32.mrb[0].mxu0
    %v194 = vadd.f32 %v106, %v193
    %v195 = vpop.f32.mrb[0].mxu0
    %196 = vmatprep.mubr.f32.mxu0 0.0
    %197 = vmatmul.mubr.f32.gmra.mrb[0].mxu0 %v113
    %v198 = vpop.f32.mrb[0].mxu0
    %v199 = vadd.f32 %v106, %v198
    %v200 = vpop.f32.mrb[0].mxu0
    %201 = vdwg.mxu0
    %v202 = vld [vmem:[#allocation10] sm:$0x1]
    %v204 = vlaneseq
    %v205 = vshrl.u32 %v204, 7
    %v206 = vsub.s32 0, %v205
    %v207 = vrot.slane %v202, %v206
    %v210 = vsel %vm108, %v97, 0
    %v213 = vsel %vm108, %v98, 0
    %v216 = vsel %vm108, %v99, 0
    %v219 = vsel %vm108, %v100, 0
    %221 = vmatprep.subr.mxu0 0.0
    %222 = vmatpush1.xpose.msra.mxu0 %v210
    %223 = vmatprep.subr.mxu0 0.0
    %224 = vmatpush1.xpose.msra.mxu0 %v213
    %225 = vmatprep.subr.mxu0 0.0
    %226 = vmatpush1.xpose.msra.mxu0 %v216
    %227 = vmatprep.subr.mxu0 0.0
    %228 = vmatpush1.xpose.msra.mxu0 %v219
    %229 = vmatprep.subr.mxu0 0.0
    %230 = vmatpush1.xpose.msra.mxu0 0.0
    %231 = vmatprep.subr.mxu0 0.0
    %232 = vmatpush1.xpose.msra.mxu0 0.0
    %233 = vmatprep.subr.mxu0 0.0
    %234 = vmatpush1.xpose.msra.mxu0 0.0
    %235 = vmatprep.subr.mxu0 0.0
    %236 = vmatpush1.xpose.msra.mxu0 0.0
    %237 = vmatprep.subr.mxu0 0.0
    %238 = vmatpush1.xpose.msra.mxu0 0.0
    %239 = vmatprep.subr.mxu0 0.0
    %240 = vmatpush1.xpose.msra.mxu0 0.0
    %241 = vmatprep.subr.mxu0 0.0
    %242 = vmatpush1.xpose.msra.mxu0 0.0
    %243 = vmatprep.subr.mxu0 0.0
    %244 = vmatpush1.xpose.msra.mxu0 0.0
    %245 = vmatprep.subr.mxu0 0.0
    %246 = vmatpush1.xpose.msra.mxu0 0.0
    %247 = vmatprep.subr.mxu0 0.0
    %248 = vmatpush1.xpose.msra.mxu0 0.0
    %249 = vmatprep.subr.mxu0 0.0
    %250 = vmatpush1.xpose.msra.mxu0 0.0
    %251 = vmatprep.subr.mxu0 0.0
    %252 = vmatpush1.xpose.msra.mxu0 0.0
    %253 = vmatprep.subr.mxu0 0.0
    %254 = vmatpush1.xpose.msra.mxu0 0.0
    %255 = vmatprep.subr.mxu0 0.0
    %256 = vmatpush1.xpose.msra.mxu0 0.0
    %257 = vmatprep.subr.mxu0 0.0
    %258 = vmatpush1.xpose.msra.mxu0 0.0
    %259 = vmatprep.subr.mxu0 0.0
    %260 = vmatpush1.xpose.msra.mxu0 0.0
    %261 = vmatprep.subr.mxu0 0.0
    %262 = vmatpush1.xpose.msra.mxu0 0.0
    %263 = vmatprep.subr.mxu0 0.0
    %264 = vmatpush1.xpose.msra.mxu0 0.0
    %265 = vmatprep.subr.mxu0 0.0
    %266 = vmatpush1.xpose.msra.mxu0 0.0
    %267 = vmatprep.subr.mxu0 0.0
    %268 = vmatpush1.xpose.msra.mxu0 0.0
    %269 = vmatprep.subr.mxu0 0.0
    %270 = vmatpush1.xpose.msra.mxu0 0.0
    %271 = vmatprep.subr.mxu0 0.0
    %272 = vmatpush1.xpose.msra.mxu0 0.0
    %273 = vmatprep.subr.mxu0 0.0
    %274 = vmatpush1.xpose.msra.mxu0 0.0
    %275 = vmatprep.subr.mxu0 0.0
    %276 = vmatpush1.xpose.msra.mxu0 0.0
    %277 = vmatprep.subr.mxu0 0.0
    %278 = vmatpush1.xpose.msra.mxu0 0.0
    %279 = vmatprep.subr.mxu0 0.0
    %280 = vmatpush1.xpose.msra.mxu0 0.0
    %281 = vmatprep.subr.mxu0 0.0
    %282 = vmatpush1.xpose.msra.mxu0 0.0
    %283 = vmatprep.subr.mxu0 0.0
    %284 = vmatpush1.xpose.msra.mxu0 0.0
    %285 = vmatprep.mubr.f32.mxu0 0.0
    %286 = vmatmul.mubr.f32.gmra.mrb[0].mxu0 %v110
    %v287 = vpop.f32.mrb[0].mxu0
    %v288 = vadd.f32 %v207, %v287
    %v289 = vpop.f32.mrb[0].mxu0
    %290 = vmatprep.mubr.f32.mxu0 0.0
    %291 = vmatmul.mubr.f32.gmra.mrb[0].mxu0 %v113
    %v292 = vpop.f32.mrb[0].mxu0
    %v293 = vadd.f32 %v207, %v292
    %v294 = vpop.f32.mrb[0].mxu0
    %295 = vdwg.mxu0
    %v296 = vmul.f32 %v288, 0.5
    %v297 = vmul.f32 %v293, 0.5
    %v298 = vmul.f32 %v288, 0.70710677
    %v299 = vmul.f32 %v293, 0.70710677
    %v300 = verf.f32.pop %v298
    %v301 = verf.f32.pop %v299
    %v302 = vadd.f32 %v300, 1.0
    %v303 = vadd.f32 %v301, 1.0
    %v304 = vmul.f32 %v296, %v302
    %v305 = vmul.f32 %v297, %v303
    %v306 = vmul.f32 %v194, %v304
    %v307 = vmul.f32 %v199, %v305
    %308 = vst.msk [vmem:[#allocation11] sm:$0xff] %vm108, %v306
    %309 = vst.msk [vmem:[#allocation11 + $0x8] sm:$0xff] %vm108, %v307
    // Predicated region
    $region42: #{_geglu_call.1} parent=1 // pred_check
      _
    $region43: #{_geglu_call.1} parent=1 // pred_check_branch
      %311 = sbr.rel (0) target = $region45
    $region44: #{_geglu_call.1} parent=1 // pred_region
      %s313 = ssub.s32 256, 256
      %314 = vsyncadd [#allocation4], %s313
      %s315 = sshll.u32 [#allocation11], 4
      %s316 = int_to_ptr.vmem [resolvable:$true] %s315
      %321 = dma.vmem_to_hbm [thread:$0]  %s316, 256, %s5, [#allocation4], 128, 128, 8
    $region45: #{_geglu_call.1} parent=1 // pred_fallthru
      _
    // Predicated region
    $region46: #{_geglu_call.1} parent=1 // pred_check
      _
    $region47: #{_geglu_call.1} parent=1 // pred_check_branch
      %323 = sbr.rel (0) target = $region49
    $region48: #{_geglu_call.1} parent=1 // pred_region
      %324 = dma.done [#allocation4], 256
    $region49: #{_geglu_call.1} parent=1 // pred_fallthru
      _
    %325 = vsyncpa [#allocation3], 1
    %326 = vsyncpa [#allocation6], 1
    %327 = vsyncpa [#allocation9], 1
    %328 = vsyncpa [#allocation4], 1

</llo_original>
